<compile_context>
chip_gen: v7x
topology: tpu7x:2x2x1
jax: 0.10.0
libtpu: 0.0.40
codegen_flags: <defaults>
</compile_context>

<pallas_src>
import jax
import jax.numpy as jnp
from jax.experimental import pallas as pl
from jax.experimental.pallas import tpu as pltpu

IN_DIM = 24 * 24  # 576


def _round_up(v, m):
    return -(-v // m) * m


def netlin2_kernel(x_ref, w1_ref, b1_ref, w2_ref, b2_ref, w3_ref, b3_ref, o_ref):
    # x arrives as f32 from HBM; cast to bf16 on the VPU right before the MXU.
    x = x_ref[...].astype(w1_ref.dtype)
    # Layer 0: Linear(576 -> H1) + ReLU (the duplicated torch.relu is a no-op).
    h = jnp.dot(x, w1_ref[...], preferred_element_type=jnp.float32)
    h = jnp.maximum(h + b1_ref[...], 0.0)
    # Layer 1: Linear(H1 -> 128) + ReLU.
    h = jnp.dot(h.astype(w2_ref.dtype), w2_ref[...],
                preferred_element_type=jnp.float32)
    h = jnp.maximum(h + b2_ref[...], 0.0)
    # Layer 2: Linear(128 -> 1) + sigmoid as VPU multiply + XLU lane reduce
    # (an N=1 MXU matmul would use 1/128..1/256 of the array).
    z = jnp.sum(h * w3_ref[...], axis=-1, keepdims=True) + b3_ref[0, 0]
    o_ref[...] = jax.nn.sigmoid(z).astype(o_ref.dtype)


def prepare_params(params, compute_dtype=jnp.bfloat16):
    """One-time glue: transpose PyTorch (out,in) weights to (in,out), zero-pad
    the hidden width to a multiple of 128 lanes, cast MXU operands to bf16."""
    w1, b1 = params["w1"], params["b1"]   # (sizefirst, 576), (sizefirst,)
    w2, b2 = params["w2"], params["b2"]   # (128, sizefirst), (128,)
    w3, b3 = params["w3"], params["b3"]   # (1, 128), (1,)
    sizefirst = w1.shape[0]
    h1 = _round_up(sizefirst, 128)        # padded hidden width (lane-aligned)

    w1t = jnp.zeros((IN_DIM, h1), jnp.float32).at[:, :sizefirst].set(w1.T)
    b1r = jnp.zeros((1, h1), jnp.float32).at[:, :sizefirst].set(b1[None, :])
    w2t = jnp.zeros((h1, 128), jnp.float32).at[:sizefirst, :].set(w2.T)
    b2r = b2.reshape(1, 128).astype(jnp.float32)
    w3r = w3.reshape(1, 128).astype(jnp.float32)   # stays f32 (VPU reduce)
    b3s = b3.reshape(1, 1).astype(jnp.float32)     # scalar -> SMEM

    return {
        "w1t": w1t.astype(compute_dtype),
        "b1r": b1r,
        "w2t": w2t.astype(compute_dtype),
        "b2r": b2r,
        "w3r": w3r,
        "b3s": b3s,
    }


def _netlin2_call(x, rows, tile_b, prepped):
    """One pallas_call over the first `rows` rows of x (rows % tile_b == 0).
    x may have MORE rows than `rows`; the extra rows are simply never visited
    (no slicing / no copy of the bulk activation)."""
    w1t, b1r = prepped["w1t"], prepped["b1r"]
    w2t, b2r = prepped["w2t"], prepped["b2r"]
    w3r, b3s = prepped["w3r"], prepped["b3s"]
    h1 = w1t.shape[1]
    n_steps = rows // tile_b

    const2 = lambda i: (0, 0)   # weights/biases: resident across all steps

    # v7x has only 64 MiB physical VMEM: avoid double-buffering big weights.
    if h1 >= 2048:
        def w_spec(shape):
            return pl.BlockSpec(shape, const2, pipeline_mode=pl.Buffered(1))
    else:
        def w_spec(shape):
            return pl.BlockSpec(shape, const2)

    weight_bytes = (IN_DIM * h1 + h1 * 128) * 2 + (h1 + 128 + 128 + 1) * 4
    cost = pl.CostEstimate(
        flops=2 * rows * (IN_DIM * h1 + h1 * 128 + 128),
        transcendentals=2 * rows,                       # sigmoid ~ exp + recip
        bytes_accessed=rows * (IN_DIM * 4 + 4) + weight_bytes,
    )

    vmem_limit = (32 << 20) if tile_b <= 2048 else (64 << 20)

    return pl.pallas_call(
        netlin2_kernel,
        out_shape=jax.ShapeDtypeStruct((rows, 1), jnp.float32),
        grid=(n_steps,),
        in_specs=[
            pl.BlockSpec((tile_b, IN_DIM), lambda i: (i, 0)),   # x tile (f32)
            w_spec((IN_DIM, h1)),                               # W1 (in,out)
            w_spec((1, h1)),                                    # b1 row
            w_spec((h1, 128)),                                  # W2 (in,out)
            w_spec((1, 128)),                                   # b2 row
            w_spec((1, 128)),                                   # w3 row (VPU)
            pl.BlockSpec(memory_space=pltpu.MemorySpace.SMEM),  # b3 scalar
        ],
        out_specs=pl.BlockSpec((tile_b, 1), lambda i: (i, 0)),
        compiler_params=pltpu.CompilerParams(
            dimension_semantics=("parallel",),
            vmem_limit_bytes=vmem_limit,
        ),
        cost_estimate=cost,
    )(x, w1t, b1r, w2t, b2r, w3r, b3s)


def netlin2_forward(x_nchw, prepped, *, tile_b_max=2048):
    """x_nchw: (B, 1, 24, 24) float32. prepped: output of prepare_params()."""
    B = x_nchw.shape[0]
    x = x_nchw.reshape(B, IN_DIM)          # == x.view(-1, 576); stays f32

    # Tile choice: multiple of 16 (bf16 sublane packing), capped by
    # tile_b_max and by ~ceil(B/4) so the grid has >=2 parallel steps on v7x.
    tile_b_max = _round_up(max(int(tile_b_max), 16), 16)
    tile_b = min(tile_b_max,
                 max(16, _round_up(_round_up(B, 4) // 4, 16)),
                 _round_up(B, 16))

    n_full_tiles = B // tile_b
    n_full = n_full_tiles * tile_b
    tail = B - n_full

    outs = []
    if n_full_tiles > 0:
        # Full x array passed in; grid only visits the full tiles (no copy/pad).
        outs.append(_netlin2_call(x, n_full, tile_b, prepped))
    if tail > 0:
        # Tiny tail: pad only the tail slice up to a 16-row tile.
        tail_rows = _round_up(tail, 16)
        x_tail = jnp.zeros((tail_rows, IN_DIM), x.dtype).at[:tail].set(x[n_full:])
        outs.append(_netlin2_call(x_tail, tail_rows, tail_rows, prepped)[:tail])

    return outs[0] if len(outs) == 1 else jnp.concatenate(outs, axis=0)


def init_params(key, sizefirst):
    """Deterministic init matching PyTorch Linear shapes (out, in)."""
    def linear_init(k, fan_in, fan_out):
        kw, kb = jax.random.split(k)
        bound = 1.0 / jnp.sqrt(fan_in)
        w = jax.random.uniform(kw, (fan_out, fan_in), jnp.float32, -bound, bound)
        b = jax.random.uniform(kb, (fan_out,), jnp.float32, -bound, bound)
        return w, b

    k1, k2, k3 = jax.random.split(key, 3)
    w1, b1 = linear_init(k1, IN_DIM, sizefirst)
    w2, b2 = linear_init(k2, sizefirst, 128)
    w3, b3 = linear_init(k3, 128, 1)
    return {"w1": w1, "b1": b1, "w2": w2, "b2": b2, "w3": w3, "b3": b3}


def reference_forward(x_nchw, params):
    """Pure-JAX f32 reference of the PyTorch forward."""
    x = x_nchw.reshape(x_nchw.shape[0], IN_DIM)
    h = jnp.maximum(x @ params["w1"].T + params["b1"], 0.0)
    h = jnp.maximum(h @ params["w2"].T + params["b2"], 0.0)
    z = h @ params["w3"].T + params["b3"]
    return jax.nn.sigmoid(z)


if __name__ == "__main__":
    key = jax.random.PRNGKey(0)
    k_in, k_p = jax.random.split(key)

    sizefirst = 64
    B = 32
    x = jax.random.normal(k_in, (B, 1, 24, 24), jnp.float32)
    params = init_params(k_p, sizefirst)
    prepped = prepare_params(params)
    ref = reference_forward(x, params)

    # Aligned multi-step path: B=32, tile_b=16 -> grid=(2,) (2 parallel steps).
    out = jax.block_until_ready(netlin2_forward(x, prepped))
    assert out.shape == (B, 1)
    # bf16 MXU operands -> loosened tolerance vs the f32 reference.
    assert jnp.allclose(out, ref, atol=2e-2, rtol=2e-2), "mismatch (aligned)"

    # Full tiles + padded-tail path: B=24 -> one 16-row tile + 8-row tail call.
    out2 = jax.block_until_ready(netlin2_forward(x[:24], prepped))
    assert out2.shape == (24, 1)
    assert jnp.allclose(out2, ref[:24], atol=2e-2, rtol=2e-2), "mismatch (main+tail)"

    # Tail-only ragged path: B=10 < tile -> single padded 16-row call.
    out3 = jax.block_until_ready(netlin2_forward(x[:10], prepped))
    assert out3.shape == (10, 1)
    assert jnp.allclose(out3, ref[:10], atol=2e-2, rtol=2e-2), "mismatch (tail only)"

    print("KERNEL_OK")
</pallas_src>

<mosaic_0001>
module attributes {stable_mosaic.version = 11 : i64} {
  func.func @netlin2_kernel(%arg0: i32, %arg1: memref<16x576xf32, #tpu.memory_space<vmem>>, %arg2: memref<576x128xbf16, #tpu.memory_space<vmem>>, %arg3: memref<1x128xf32, #tpu.memory_space<vmem>>, %arg4: memref<128x128xbf16, #tpu.memory_space<vmem>>, %arg5: memref<1x128xf32, #tpu.memory_space<vmem>>, %arg6: memref<1x128xf32, #tpu.memory_space<vmem>>, %arg7: memref<1x1xf32, #tpu.memory_space<smem>>, %arg8: memref<16x1xf32, #tpu.memory_space<vmem>>) attributes {dimension_semantics = [#tpu.dimension_semantics<parallel>], iteration_bounds = array<i64: 2>, scalar_prefetch = 0 : i64, scratch_operands = 0 : i64, tpu.core_type = #tpu.core_type<tc>, window_params = [{transform_indices = @transform_0, window_bounds = array<i64: 16, 576>}, {pipeline_mode = #tpu.pipeline_mode<synchronous>, transform_indices = @transform_1, window_bounds = array<i64: 576, 128>}, {pipeline_mode = #tpu.pipeline_mode<synchronous>, transform_indices = @transform_2, window_bounds = array<i64: 1, 128>}, {pipeline_mode = #tpu.pipeline_mode<synchronous>, transform_indices = @transform_3, window_bounds = array<i64: 128, 128>}, {pipeline_mode = #tpu.pipeline_mode<synchronous>, transform_indices = @transform_4, window_bounds = array<i64: 1, 128>}, {pipeline_mode = #tpu.pipeline_mode<synchronous>, transform_indices = @transform_5, window_bounds = array<i64: 1, 128>}, {transform_indices = @transform_6, window_bounds = array<i64: 1, 1>}, {transform_indices = @transform_7, window_bounds = array<i64: 16, 1>}]} {
    %c0 = arith.constant 0 : index
    %c0_0 = arith.constant 0 : index
    %0 = vector.load %arg1[%c0, %c0_0] : memref<16x576xf32, #tpu.memory_space<vmem>>, vector<16x576xf32>
    %1 = arith.truncf %0 : vector<16x576xf32> to vector<16x576xbf16>
    %c0_1 = arith.constant 0 : index
    %c0_2 = arith.constant 0 : index
    %2 = vector.load %arg2[%c0_1, %c0_2] : memref<576x128xbf16, #tpu.memory_space<vmem>>, vector<576x128xbf16>
    %cst = arith.constant dense<0.000000e+00> : vector<16x128xf32>
    %3 = tpu.matmul %1, %2, %cst {dimension_numbers = #tpu.dot_dimension_numbers<[1], [0], [0], [1], [0, 0, 1, 1], [], []>} : vector<16x576xbf16>, vector<576x128xbf16>, vector<16x128xf32> -> vector<16x128xf32>
    %c0_3 = arith.constant 0 : index
    %c0_4 = arith.constant 0 : index
    %4 = vector.load %arg3[%c0_3, %c0_4] : memref<1x128xf32, #tpu.memory_space<vmem>>, vector<1x128xf32>
    %5 = vector.broadcast %4 : vector<1x128xf32> to vector<16x128xf32>
    %6 = arith.addf %3, %5 : vector<16x128xf32>
    %cst_5 = arith.constant 0.000000e+00 : f32
    %7 = vector.broadcast %cst_5 : f32 to vector<16x128xf32>
    %8 = arith.maximumf %6, %7 : vector<16x128xf32>
    %9 = arith.truncf %8 : vector<16x128xf32> to vector<16x128xbf16>
    %c0_6 = arith.constant 0 : index
    %c0_7 = arith.constant 0 : index
    %10 = vector.load %arg4[%c0_6, %c0_7] : memref<128x128xbf16, #tpu.memory_space<vmem>>, vector<128x128xbf16>
    %cst_8 = arith.constant dense<0.000000e+00> : vector<16x128xf32>
    %11 = tpu.matmul %9, %10, %cst_8 {dimension_numbers = #tpu.dot_dimension_numbers<[1], [0], [0], [1], [0, 0, 1, 1], [], []>} : vector<16x128xbf16>, vector<128x128xbf16>, vector<16x128xf32> -> vector<16x128xf32>
    %c0_9 = arith.constant 0 : index
    %c0_10 = arith.constant 0 : index
    %12 = vector.load %arg5[%c0_9, %c0_10] : memref<1x128xf32, #tpu.memory_space<vmem>>, vector<1x128xf32>
    %13 = vector.broadcast %12 : vector<1x128xf32> to vector<16x128xf32>
    %14 = arith.addf %11, %13 : vector<16x128xf32>
    %cst_11 = arith.constant 0.000000e+00 : f32
    %15 = vector.broadcast %cst_11 : f32 to vector<16x128xf32>
    %16 = arith.maximumf %14, %15 : vector<16x128xf32>
    %c0_12 = arith.constant 0 : index
    %c0_13 = arith.constant 0 : index
    %17 = vector.load %arg6[%c0_12, %c0_13] : memref<1x128xf32, #tpu.memory_space<vmem>>, vector<1x128xf32>
    %18 = vector.broadcast %17 : vector<1x128xf32> to vector<16x128xf32>
    %19 = arith.mulf %16, %18 : vector<16x128xf32>
    %cst_14 = arith.constant dense<0.000000e+00> : vector<16xf32>
    %20 = vector.multi_reduction <add>, %19, %cst_14 [1] : vector<16x128xf32> to vector<16xf32>
    %21 = vector.shape_cast %20 : vector<16xf32> to vector<16x1xf32>
    %c0_15 = arith.constant 0 : index
    %c0_16 = arith.constant 0 : index
    %22 = memref.load %arg7[%c0_15, %c0_16] : memref<1x1xf32, #tpu.memory_space<smem>>
    %23 = vector.broadcast %22 : f32 to vector<16x1xf32>
    %24 = arith.addf %21, %23 : vector<16x1xf32>
    %25 = arith.negf %24 : vector<16x1xf32>
    %26 = math.exp %25 : vector<16x1xf32>
    %cst_17 = arith.constant 1.000000e+00 : f32
    %27 = vector.broadcast %cst_17 : f32 to vector<16x1xf32>
    %28 = arith.addf %27, %26 : vector<16x1xf32>
    %29 = arith.divf %27, %28 : vector<16x1xf32>
    %c0_18 = arith.constant 0 : index
    %c0_19 = arith.constant 0 : index
    %30 = vector.load %arg8[%c0_18, %c0_19] : memref<16x1xf32, #tpu.memory_space<vmem>>, vector<16x1xf32>
    tpu.vector_store %arg8[%c0_18, %c0_19], %29 {strides = array<i32>} : memref<16x1xf32, #tpu.memory_space<vmem>>, vector<16x1xf32>,
    return
  }
  func.func @transform_0(%arg0: i32) -> (i32, i32) {
    %c0_i32 = arith.constant 0 : i32
    %c0_i32_0 = arith.constant 0 : i32
    return %arg0, %c0_i32 : i32, i32
  }
  func.func @transform_1(%arg0: i32) -> (i32, i32) {
    %c0_i32 = arith.constant 0 : i32
    %c0_i32_0 = arith.constant 0 : i32
    %c0_i32_1 = arith.constant 0 : i32
    return %c0_i32, %c0_i32_0 : i32, i32
  }
  func.func @transform_2(%arg0: i32) -> (i32, i32) {
    %c0_i32 = arith.constant 0 : i32
    %c0_i32_0 = arith.constant 0 : i32
    %c0_i32_1 = arith.constant 0 : i32
    return %c0_i32, %c0_i32_0 : i32, i32
  }
  func.func @transform_3(%arg0: i32) -> (i32, i32) {
    %c0_i32 = arith.constant 0 : i32
    %c0_i32_0 = arith.constant 0 : i32
    %c0_i32_1 = arith.constant 0 : i32
    return %c0_i32, %c0_i32_0 : i32, i32
  }
  func.func @transform_4(%arg0: i32) -> (i32, i32) {
    %c0_i32 = arith.constant 0 : i32
    %c0_i32_0 = arith.constant 0 : i32
    %c0_i32_1 = arith.constant 0 : i32
    return %c0_i32, %c0_i32_0 : i32, i32
  }
  func.func @transform_5(%arg0: i32) -> (i32, i32) {
    %c0_i32 = arith.constant 0 : i32
    %c0_i32_0 = arith.constant 0 : i32
    %c0_i32_1 = arith.constant 0 : i32
    return %c0_i32, %c0_i32_0 : i32, i32
  }
  func.func @transform_6(%arg0: i32) -> (i32, i32) {
    %c0_i32 = arith.constant 0 : i32
    %c0_i32_0 = arith.constant 0 : i32
    %c0_i32_1 = arith.constant 0 : i32
    return %c0_i32, %c0_i32_0 : i32, i32
  }
  func.func @transform_7(%arg0: i32) -> (i32, i32) {
    %c0_i32 = arith.constant 0 : i32
    %c0_i32_0 = arith.constant 0 : i32
    return %arg0, %c0_i32 : i32, i32
  }
}

</mosaic_0001>

<llo_original>
// kernel: tpu_custom_call.1
$region0: #{tpu_custom_call.1}
  #allocation0 [shape = 'u32[]', space=smem, size = 0x4, offset = 0x4, fixed_abs, tag = 'smem constant byte address 0x4 - core index']
  #allocation1 [shape = 'u32[144,128]{1,0:T(1,128)}', space=vmem, size = 0x12000, scoped, tag = 'internal scratch']
  #allocation2 [shape = 'f32[1,1]{1,0:T(1,128)S(6)}', space=smem, size = 0x200, scoped, tag = 'scoped memory for tpu_custom_call.1']
  %s0 = inlined_call_operand.hbm [shape: f32[32,576], index: 0, kind: input, shape index: {}]
  %s1 = inlined_call_operand.hbm [shape: bf16[576,128], index: 1, kind: input, shape index: {}]
  %s2 = inlined_call_operand.vmem [shape: f32[1,128], index: 2, kind: input, shape index: {}]
  %s3 = inlined_call_operand.hbm [shape: bf16[128,128], index: 3, kind: input, shape index: {}]
  %s4 = inlined_call_operand.vmem [shape: f32[1,128], index: 4, kind: input, shape index: {}]
  %s5 = inlined_call_operand.vmem [shape: f32[1,128], index: 5, kind: input, shape index: {}]
  %s6 = inlined_call_operand.<no memory space> [shape: f32[1,1], index: 6, kind: input, shape index: {}]
  %s7 = inlined_call_operand.vmem [shape: f32[32,1], index: 7, kind: output, shape index: {}]
  %s8 = sld [smem:[#allocation0]]
  $region73: #{tpu_custom_call.1} parent=0
    _
  %s10 = ssub.s32 1, %s8
  %s11 = scalar_select 0, %s10, %s8
  %12 = sst [smem:[#allocation2]] %s6
  $region1: #{tpu_custom_call.1} parent=0
    #allocation3 [shape = 'u8[81920]{0}', space=vmem, size = 0x14000, scoped, tag = 'input window, operand 0']
    #allocation4 [shape = 's32[2]{0}', space=sflag, size = 0x8, scoped, tag = 'scoped memory for tpu_custom_call.1']
    #allocation5 [shape = 'u8[147456]{0}', space=vmem, size = 0x24000, scoped, tag = 'input window, operand 1, single buffered']
    #allocation6 [shape = 's32[1]{0}', space=sflag, size = 0x4, scoped, tag = 'scoped memory for tpu_custom_call.1']
    #allocation7 [shape = 'u8[32768]{0}', space=vmem, size = 0x8000, scoped, tag = 'input window, operand 3, single buffered']
    %13 = vsyncpa [#allocation4], 0
    %s14 = scalar_lea.sflag [#allocation4], 1
    %15 = vsyncpa %s14, 0
    %16 = vsyncpa [#allocation6], 0
    loop: start=0, step=1, limit=4
    $region2: #{tpu_custom_call.1} parent=1 // loop_pre_header
      _
    $region3: #{tpu_custom_call.1} parent=1 // loop_header
      %s18 = sphi 0, %s22
      %p19 = scmp.ge.s32.totalorder %s18, 4
      %s28 = sphi 0, %s30
      %s31 = sphi 0, %s28
      %s32 = sphi 0, %s31
      %s48 = sphi 0, %s32
      %s52 = sphi 0, %s52
      %s54 = sphi 0, %s52
      %s55 = sphi 0, %s54
      %s69 = sphi 0, %s55
      %s73 = sphi 0, %s73
      %s75 = sphi 0, %s73
      %s76 = sphi 0, %s75
      %s90 = sphi 0, %s76
      %s94 = sphi 0, %s94
      %s96 = sphi 0, %s94
      %s97 = sphi 0, %s96
      %s111 = sphi 0, %s97
      %s115 = sphi 0, %s115
      %s117 = sphi 0, %s115
      %s118 = sphi 0, %s117
      %s132 = sphi 0, %s118
      %s136 = sphi 0, %s136
      %s138 = sphi 0, %s136
      %s139 = sphi 0, %s138
      %s153 = sphi 0, %s139
      %s157 = sphi 0, %s157
      %s159 = sphi 0, %s157
      %s160 = sphi 0, %s159
      %s174 = sphi 0, %s160
      %s180 = sphi 0, %s182
      %s183 = sphi 0, %s180
      %s184 = sphi 0, %s183
      %s200 = sphi 0, %s184
    $region4: #{tpu_custom_call.1} parent=1 // loop_header_branch
      %21 = sbr.rel (%p19) target = $region8
    $region5: #{tpu_custom_call.1} parent=1 // loop_body
      %s23 = ssub.s32 %s18, 1
      %s24 = ssub.s32 %s18, 2
      %s25 = sadd.s32 %s18, 1
      %s26 = ssub.s32 %s18, %s25
      %p27 = scmp.eq.s32.totalorder %s26, 0
      %s29 = sadd.s32 %s28, 1
      %s30 = scalar_select %p27, %s28, %s29
      %p33 = pneg %p27
      %p34 = scmp.eq.s32.totalorder %s18, 1
      %p35 = por %p33, %p34
      %p36 = scmp.ne.s32.totalorder %s28, %s31
      %p37 = scmp.eq.s32.totalorder %s18, 0
      %p38 = por %p36, %p37
      %p39 = scmp.ne.s32.totalorder %s28, %s31
      %p40 = scmp.eq.s32.totalorder %s23, 1
      %p41 = por %p39, %p40
      %p42 = scmp.ne.s32.totalorder %s31, %s32
      %p43 = scmp.eq.s32.totalorder %s23, 0
      %p44 = por %p42, %p43
      %p45 = scmp.ne.s32.totalorder %s31, %s32
      %p46 = scmp.eq.s32.totalorder %s24, 1
      %p47 = por %p45, %p46
      %p49 = scmp.ne.s32.totalorder %s32, %s48
      %p50 = scmp.eq.s32.totalorder %s24, 0
      %p51 = por %p49, %p50
      %s53 = sadd.s32 %s52, 1
      %p56 = scmp.eq.s32.totalorder %s18, 1
      %p57 = scmp.ne.s32.totalorder %s52, %s54
      %p58 = scmp.eq.s32.totalorder %s18, 0
      %p59 = por %p57, %p58
      %p60 = scmp.ne.s32.totalorder %s52, %s54
      %p61 = scmp.eq.s32.totalorder %s23, 1
      %p62 = por %p60, %p61
      %p63 = scmp.ne.s32.totalorder %s54, %s55
      %p64 = scmp.eq.s32.totalorder %s23, 0
      %p65 = por %p63, %p64
      %p66 = scmp.ne.s32.totalorder %s54, %s55
      %p67 = scmp.eq.s32.totalorder %s24, 1
      %p68 = por %p66, %p67
      %p70 = scmp.ne.s32.totalorder %s55, %s69
      %p71 = scmp.eq.s32.totalorder %s24, 0
      %p72 = por %p70, %p71
      %s74 = sadd.s32 %s73, 1
      %p77 = scmp.eq.s32.totalorder %s18, 1
      %p78 = scmp.ne.s32.totalorder %s73, %s75
      %p79 = scmp.eq.s32.totalorder %s18, 0
      %p80 = por %p78, %p79
      %p81 = scmp.ne.s32.totalorder %s73, %s75
      %p82 = scmp.eq.s32.totalorder %s23, 1
      %p83 = por %p81, %p82
      %p84 = scmp.ne.s32.totalorder %s75, %s76
      %p85 = scmp.eq.s32.totalorder %s23, 0
      %p86 = por %p84, %p85
      %p87 = scmp.ne.s32.totalorder %s75, %s76
      %p88 = scmp.eq.s32.totalorder %s24, 1
      %p89 = por %p87, %p88
      %p91 = scmp.ne.s32.totalorder %s76, %s90
      %p92 = scmp.eq.s32.totalorder %s24, 0
      %p93 = por %p91, %p92
      %s95 = sadd.s32 %s94, 1
      %p98 = scmp.eq.s32.totalorder %s18, 1
      %p99 = scmp.ne.s32.totalorder %s94, %s96
      %p100 = scmp.eq.s32.totalorder %s18, 0
      %p101 = por %p99, %p100
      %p102 = scmp.ne.s32.totalorder %s94, %s96
      %p103 = scmp.eq.s32.totalorder %s23, 1
      %p104 = por %p102, %p103
      %p105 = scmp.ne.s32.totalorder %s96, %s97
      %p106 = scmp.eq.s32.totalorder %s23, 0
      %p107 = por %p105, %p106
      %p108 = scmp.ne.s32.totalorder %s96, %s97
      %p109 = scmp.eq.s32.totalorder %s24, 1
      %p110 = por %p108, %p109
      %p112 = scmp.ne.s32.totalorder %s97, %s111
      %p113 = scmp.eq.s32.totalorder %s24, 0
      %p114 = por %p112, %p113
      %s116 = sadd.s32 %s115, 1
      %p119 = scmp.eq.s32.totalorder %s18, 1
      %p120 = scmp.ne.s32.totalorder %s115, %s117
      %p121 = scmp.eq.s32.totalorder %s18, 0
      %p122 = por %p120, %p121
      %p123 = scmp.ne.s32.totalorder %s115, %s117
      %p124 = scmp.eq.s32.totalorder %s23, 1
      %p125 = por %p123, %p124
      %p126 = scmp.ne.s32.totalorder %s117, %s118
      %p127 = scmp.eq.s32.totalorder %s23, 0
      %p128 = por %p126, %p127
      %p129 = scmp.ne.s32.totalorder %s117, %s118
      %p130 = scmp.eq.s32.totalorder %s24, 1
      %p131 = por %p129, %p130
      %p133 = scmp.ne.s32.totalorder %s118, %s132
      %p134 = scmp.eq.s32.totalorder %s24, 0
      %p135 = por %p133, %p134
      %s137 = sadd.s32 %s136, 1
      %p140 = scmp.eq.s32.totalorder %s18, 1
      %p141 = scmp.ne.s32.totalorder %s136, %s138
      %p142 = scmp.eq.s32.totalorder %s18, 0
      %p143 = por %p141, %p142
      %p144 = scmp.ne.s32.totalorder %s136, %s138
      %p145 = scmp.eq.s32.totalorder %s23, 1
      %p146 = por %p144, %p145
      %p147 = scmp.ne.s32.totalorder %s138, %s139
      %p148 = scmp.eq.s32.totalorder %s23, 0
      %p149 = por %p147, %p148
      %p150 = scmp.ne.s32.totalorder %s138, %s139
      %p151 = scmp.eq.s32.totalorder %s24, 1
      %p152 = por %p150, %p151
      %p154 = scmp.ne.s32.totalorder %s139, %s153
      %p155 = scmp.eq.s32.totalorder %s24, 0
      %p156 = por %p154, %p155
      %s158 = sadd.s32 %s157, 1
      %p161 = scmp.eq.s32.totalorder %s18, 1
      %p162 = scmp.ne.s32.totalorder %s157, %s159
      %p163 = scmp.eq.s32.totalorder %s18, 0
      %p164 = por %p162, %p163
      %p165 = scmp.ne.s32.totalorder %s157, %s159
      %p166 = scmp.eq.s32.totalorder %s23, 1
      %p167 = por %p165, %p166
      %p168 = scmp.ne.s32.totalorder %s159, %s160
      %p169 = scmp.eq.s32.totalorder %s23, 0
      %p170 = por %p168, %p169
      %p171 = scmp.ne.s32.totalorder %s159, %s160
      %p172 = scmp.eq.s32.totalorder %s24, 1
      %p173 = por %p171, %p172
      %p175 = scmp.ne.s32.totalorder %s160, %s174
      %p176 = scmp.eq.s32.totalorder %s24, 0
      %p177 = por %p175, %p176
      %s178 = ssub.s32 %s18, %s25
      %p179 = scmp.eq.s32.totalorder %s178, 0
      %s181 = sadd.s32 %s180, 1
      %s182 = scalar_select %p179, %s180, %s181
      %p185 = pneg %p179
      %p186 = scmp.eq.s32.totalorder %s18, 1
      %p187 = por %p185, %p186
      %p188 = scmp.ne.s32.totalorder %s180, %s183
      %p189 = scmp.eq.s32.totalorder %s18, 0
      %p190 = por %p188, %p189
      %p191 = scmp.ne.s32.totalorder %s180, %s183
      %p192 = scmp.eq.s32.totalorder %s23, 1
      %p193 = por %p191, %p192
      %p194 = scmp.ne.s32.totalorder %s183, %s184
      %p195 = scmp.eq.s32.totalorder %s23, 0
      %p196 = por %p194, %p195
      %p197 = scmp.ne.s32.totalorder %s183, %s184
      %p198 = scmp.eq.s32.totalorder %s24, 1
      %p199 = por %p197, %p198
      %p201 = scmp.ne.s32.totalorder %s184, %s200
      %p202 = scmp.eq.s32.totalorder %s24, 0
      %p203 = por %p201, %p202
      %p204 = scmp.le.s32.totalorder 1, %s18
      %p205 = scmp.lt.s32.totalorder %s18, 3
      %p206 = pnand %p204, %p205
      %p207 = pneg %p206
      // Predicated region
      $region9: #{tpu_custom_call.1} parent=5 // pred_check
        _
      $region10: #{tpu_custom_call.1} parent=5 // pred_check_branch
        %209 = sbr.rel (%p206) target = $region12
      $region11: #{tpu_custom_call.1} parent=5 // pred_region
        %s210 = ssub.s32 %s18, 1
        // Predicated region
        $region13: #{tpu_custom_call.1} parent=11 // pred_check
          %p211 = pneg %p65
        $region14: #{tpu_custom_call.1} parent=11 // pred_check_branch
          %213 = sbr.rel (%p211) target = $region16
        $region15: #{tpu_custom_call.1} parent=11 // pred_region
          %s215 = ssub.s32 4608, 4608
          %216 = vsyncadd [#allocation6], %s215
          %s217 = sshll.u32 [#allocation5], 4
          %s218 = int_to_ptr.vmem [resolvable:$true] %s217
          %223 = dma.hbm_to_vmem [thread:$0]  %s1, 4608, %s218, [#allocation6], 64, 64, 4
        $region16: #{tpu_custom_call.1} parent=11 // pred_fallthru
          _
        // Predicated region
        $region17: #{tpu_custom_call.1} parent=11 // pred_check
          %p224 = pneg %p86
        $region18: #{tpu_custom_call.1} parent=11 // pred_check_branch
          %226 = sbr.rel (%p224) target = $region20
        $region19: #{tpu_custom_call.1} parent=11 // pred_region
          _
        $region20: #{tpu_custom_call.1} parent=11 // pred_fallthru
          _
        // Predicated region
        $region21: #{tpu_custom_call.1} parent=11 // pred_check
          %p227 = pneg %p107
        $region22: #{tpu_custom_call.1} parent=11 // pred_check_branch
          %229 = sbr.rel (%p227) target = $region24
        $region23: #{tpu_custom_call.1} parent=11 // pred_region
          %s231 = ssub.s32 1024, 1024
          %232 = vsyncadd [#allocation6], %s231
          %s233 = sshll.u32 [#allocation7], 4
          %s234 = int_to_ptr.vmem [resolvable:$true] %s233
          %239 = dma.hbm_to_vmem [thread:$0]  %s3, 1024, %s234, [#allocation6], 64, 64, 4
        $region24: #{tpu_custom_call.1} parent=11 // pred_fallthru
          _
        // Predicated region
        $region25: #{tpu_custom_call.1} parent=11 // pred_check
          %p240 = pneg %p128
        $region26: #{tpu_custom_call.1} parent=11 // pred_check_branch
          %242 = sbr.rel (%p240) target = $region28
        $region27: #{tpu_custom_call.1} parent=11 // pred_region
          _
        $region28: #{tpu_custom_call.1} parent=11 // pred_fallthru
          _
        // Predicated region
        $region29: #{tpu_custom_call.1} parent=11 // pred_check
          %p243 = pneg %p149
        $region30: #{tpu_custom_call.1} parent=11 // pred_check_branch
          %245 = sbr.rel (%p243) target = $region32
        $region31: #{tpu_custom_call.1} parent=11 // pred_region
          _
        $region32: #{tpu_custom_call.1} parent=11 // pred_fallthru
          _
        // Predicated region
        $region33: #{tpu_custom_call.1} parent=11 // pred_check
          %p246 = pneg %p170
        $region34: #{tpu_custom_call.1} parent=11 // pred_check_branch
          %248 = sbr.rel (%p246) target = $region36
        $region35: #{tpu_custom_call.1} parent=11 // pred_region
          _
        $region36: #{tpu_custom_call.1} parent=11 // pred_fallthru
          _
      $region12: #{tpu_custom_call.1} parent=5 // pred_fallthru
        _
      %p249 = scmp.lt.s32.totalorder %s18, 2
      // Predicated region
      $region37: #{tpu_custom_call.1} parent=5 // pred_check
        %p250 = pneg %p249
      $region38: #{tpu_custom_call.1} parent=5 // pred_check_branch
        %252 = sbr.rel (%p250) target = $region40
      $region39: #{tpu_custom_call.1} parent=5 // pred_region
        // Predicated region
        $region41: #{tpu_custom_call.1} parent=39 // pred_check
          %p253 = pneg %p38
        $region42: #{tpu_custom_call.1} parent=39 // pred_check_branch
          %255 = sbr.rel (%p253) target = $region44
        $region43: #{tpu_custom_call.1} parent=39 // pred_region
          %s256 = sand.u32 %s28, 1
          %s257 = scalar_lea.sflag [#allocation4], %s256
          %s258 = sand.u32 %s28, 1
          %s259 = smul.addr %s258, 80
          %s260 = scalar_lea.vmem [#allocation3], %s259
          %s261 = smul.u32 2, %s18
          %s263 = ssub.s32 1280, 1280
          %264 = vsyncadd %s257, %s263
          %s265 = smul.addr %s261, 5
          %s266 = smul.addr %s265, 128
          %s267 = scalar_lea.hbm %s0, %s266
          %s268 = sshll.u32 %s260, 4
          %s269 = int_to_ptr.vmem [resolvable:$true] %s268
          %274 = dma.hbm_to_vmem [thread:$0]  %s267, 1280, %s269, %s257, 640, 640, 40
        $region44: #{tpu_custom_call.1} parent=39 // pred_fallthru
          _
      $region40: #{tpu_custom_call.1} parent=5 // pred_fallthru
        _
      %p275 = scmp.le.s32.totalorder 1, %s18
      %p276 = scmp.lt.s32.totalorder %s18, 3
      %p277 = pnand %p275, %p276
      %p278 = pneg %p277
      // Predicated region
      $region45: #{tpu_custom_call.1} parent=5 // pred_check
        _
      $region46: #{tpu_custom_call.1} parent=5 // pred_check_branch
        %280 = sbr.rel (%p277) target = $region48
      $region47: #{tpu_custom_call.1} parent=5 // pred_region
        %s281 = ssub.s32 %s18, 1
        %s282 = sand.u32 %s31, 1
        %s283 = scalar_lea.sflag [#allocation4], %s282
        %s284 = sand.u32 %s31, 1
        %s285 = smul.addr %s284, 80
        %s286 = scalar_lea.vmem [#allocation3], %s285
        // Predicated region
        $region49: #{tpu_custom_call.1} parent=47 // pred_check
          %p287 = pneg %p44
        $region50: #{tpu_custom_call.1} parent=47 // pred_check_branch
          %289 = sbr.rel (%p287) target = $region52
        $region51: #{tpu_custom_call.1} parent=47 // pred_region
          %290 = dma.done %s283, 1280
        $region52: #{tpu_custom_call.1} parent=47 // pred_fallthru
          _
        // Predicated region
        $region53: #{tpu_custom_call.1} parent=47 // pred_check
          %p291 = pneg %p65
        $region54: #{tpu_custom_call.1} parent=47 // pred_check_branch
          %293 = sbr.rel (%p291) target = $region56
        $region55: #{tpu_custom_call.1} parent=47 // pred_region
          %294 = dma.done [#allocation6], 4608
        $region56: #{tpu_custom_call.1} parent=47 // pred_fallthru
          _
        // Predicated region
        $region57: #{tpu_custom_call.1} parent=47 // pred_check
          %p295 = pneg %p107
        $region58: #{tpu_custom_call.1} parent=47 // pred_check_branch
          %297 = sbr.rel (%p295) target = $region60
        $region59: #{tpu_custom_call.1} parent=47 // pred_region
          %298 = dma.done [#allocation6], 1024
        $region60: #{tpu_custom_call.1} parent=47 // pred_fallthru
          _
        %s299 = sand.u32 %s31, 1
        %s300 = scalar_lea.sflag [#allocation4], %s299
        %s301 = sand.u32 %s31, 1
        %s302 = smul.addr %s301, 80
        %s303 = scalar_lea.vmem [#allocation3], %s302
        %p304 = pneg %p44
        %p305 = pneg %p41
        %p306 = pneg %p65
        %p307 = pneg %p62
        %p308 = pneg %p86
        %p309 = pneg %p83
        %p310 = pneg %p107
        %p311 = pneg %p104
        %p312 = pneg %p128
        %p313 = pneg %p125
        %p314 = pneg %p149
        %p315 = pneg %p146
        %p316 = pneg %p170
        %p317 = pneg %p167
        %p318 = pneg %p196
        %p319 = pneg %p193
        %s320 = smul.u32 2, %s23
        %p321 = scmp.lt.s32.totalorder %s320, 3
        %s322 = scalar_select %p321, %s320, 3
        %s323 = smul.addr %s322, 8
        %s324 = scalar_lea.vmem %s7, %s323
        %s325 = smul.u32 2, %s23
        %s326 = smul.u32 2, %s23
        %p327 = scmp.lt.s32.totalorder %s326, 3
        %s328 = scalar_select %p327, %s326, 3
        %s329 = smul.addr %s328, 8
        %s330 = scalar_lea.vmem %s7, %s329
        %s331 = smul.u32 2, %s23
        %v333 = vld [vmem:[%s286] sm:$0xff]
        %v334 = vld [vmem:[%s286 + $0x8] sm:$0xff]
        %v335 = vld [vmem:[%s286 + $0x10] sm:$0xff]
        %v336 = vld [vmem:[%s286 + $0x18] sm:$0xff]
        %v337 = vld [vmem:[%s286 + $0x20] sm:$0xff]
        %v338 = vld [vmem:[%s286 + $0x28] sm:$0xff]
        %v339 = vld [vmem:[%s286 + $0x30] sm:$0xff]
        %v340 = vld [vmem:[%s286 + $0x38] sm:$0xff]
        %v341 = vld [vmem:[%s286 + $0x40] sm:$0xff]
        %v342 = vld [vmem:[%s286 + $0x48] sm:$0xff]
        %v343 = vpack.c.bf16 %v338, %v333
        %v344 = vpack.c.bf16 %v339, %v334
        %v345 = vpack.c.bf16 %v340, %v335
        %v346 = vpack.c.bf16 %v341, %v336
        %v347 = vpack.c.bf16 %v342, %v337
        %v348 = vld [vmem:[#allocation5] sm:$0xf]
        %v349 = vld [vmem:[#allocation5 + $0x4] sm:$0xf]
        %v350 = vld [vmem:[#allocation5 + $0x8] sm:$0xf]
        %v351 = vld [vmem:[#allocation5 + $0xc] sm:$0xf]
        %v352 = vld [vmem:[#allocation5 + $0x10] sm:$0xf]
        %v353 = vld [vmem:[#allocation5 + $0x14] sm:$0xf]
        %v354 = vld [vmem:[#allocation5 + $0x18] sm:$0xf]
        %v355 = vld [vmem:[#allocation5 + $0x1c] sm:$0xf]
        %v356 = vld [vmem:[#allocation5 + $0x20] sm:$0xf]
        %v357 = vld [vmem:[#allocation5 + $0x24] sm:$0xf]
        %v358 = vld [vmem:[#allocation5 + $0x28] sm:$0xf]
        %v359 = vld [vmem:[#allocation5 + $0x2c] sm:$0xf]
        %v360 = vld [vmem:[#allocation5 + $0x30] sm:$0xf]
        %v361 = vld [vmem:[#allocation5 + $0x34] sm:$0xf]
        %v362 = vld [vmem:[#allocation5 + $0x38] sm:$0xf]
        %v363 = vld [vmem:[#allocation5 + $0x3c] sm:$0xf]
        %v364 = vld [vmem:[#allocation5 + $0x40] sm:$0xf]
        %v365 = vld [vmem:[#allocation5 + $0x44] sm:$0xf]
        %v366 = vld [vmem:[#allocation5 + $0x48] sm:$0xf]
        %v367 = vld [vmem:[#allocation5 + $0x4c] sm:$0xf]
        %v368 = vld [vmem:[#allocation5 + $0x50] sm:$0xf]
        %v369 = vld [vmem:[#allocation5 + $0x54] sm:$0xf]
        %v370 = vld [vmem:[#allocation5 + $0x58] sm:$0xf]
        %v371 = vld [vmem:[#allocation5 + $0x5c] sm:$0xf]
        %v372 = vld [vmem:[#allocation5 + $0x60] sm:$0xf]
        %v373 = vld [vmem:[#allocation5 + $0x64] sm:$0xf]
        %v374 = vld [vmem:[#allocation5 + $0x68] sm:$0xf]
        %v375 = vld [vmem:[#allocation5 + $0x6c] sm:$0xf]
        %v376 = vld [vmem:[#allocation5 + $0x70] sm:$0xf]
        %v377 = vld [vmem:[#allocation5 + $0x74] sm:$0xf]
        %v378 = vld [vmem:[#allocation5 + $0x78] sm:$0xf]
        %v379 = vld [vmem:[#allocation5 + $0x7c] sm:$0xf]
        %v380 = vld [vmem:[#allocation5 + $0x80] sm:$0xf]
        %v381 = vld [vmem:[#allocation5 + $0x84] sm:$0xf]
        %v382 = vld [vmem:[#allocation5 + $0x88] sm:$0xf]
        %v383 = vld [vmem:[#allocation5 + $0x8c] sm:$0xf]
        %v384 = vld [vmem:[#allocation5 + $0x90] sm:$0xf]
        %v385 = vld [vmem:[#allocation5 + $0x94] sm:$0xf]
        %v386 = vld [vmem:[#allocation5 + $0x98] sm:$0xf]
        %v387 = vld [vmem:[#allocation5 + $0x9c] sm:$0xf]
        %v388 = vld [vmem:[#allocation5 + $0xa0] sm:$0xf]
        %v389 = vld [vmem:[#allocation5 + $0xa4] sm:$0xf]
        %v390 = vld [vmem:[#allocation5 + $0xa8] sm:$0xf]
        %v391 = vld [vmem:[#allocation5 + $0xac] sm:$0xf]
        %v392 = vld [vmem:[#allocation5 + $0xb0] sm:$0xf]
        %v393 = vld [vmem:[#allocation5 + $0xb4] sm:$0xf]
        %v394 = vld [vmem:[#allocation5 + $0xb8] sm:$0xf]
        %v395 = vld [vmem:[#allocation5 + $0xbc] sm:$0xf]
        %v396 = vld [vmem:[#allocation5 + $0xc0] sm:$0xf]
        %v397 = vld [vmem:[#allocation5 + $0xc4] sm:$0xf]
        %v398 = vld [vmem:[#allocation5 + $0xc8] sm:$0xf]
        %v399 = vld [vmem:[#allocation5 + $0xcc] sm:$0xf]
        %v400 = vld [vmem:[#allocation5 + $0xd0] sm:$0xf]
        %v401 = vld [vmem:[#allocation5 + $0xd4] sm:$0xf]
        %v402 = vld [vmem:[#allocation5 + $0xd8] sm:$0xf]
        %v403 = vld [vmem:[#allocation5 + $0xdc] sm:$0xf]
        %v404 = vld [vmem:[#allocation5 + $0xe0] sm:$0xf]
        %v405 = vld [vmem:[#allocation5 + $0xe4] sm:$0xf]
        %v406 = vld [vmem:[#allocation5 + $0xe8] sm:$0xf]
        %v407 = vld [vmem:[#allocation5 + $0xec] sm:$0xf]
        %v408 = vld [vmem:[#allocation5 + $0xf0] sm:$0xf]
        %v409 = vld [vmem:[#allocation5 + $0xf4] sm:$0xf]
        %v410 = vld [vmem:[#allocation5 + $0xf8] sm:$0xf]
        %v411 = vld [vmem:[#allocation5 + $0xfc] sm:$0xf]
        %v412 = vld [vmem:[#allocation5 + $0x100] sm:$0xf]
        %v413 = vld [vmem:[#allocation5 + $0x104] sm:$0xf]
        %v414 = vld [vmem:[#allocation5 + $0x108] sm:$0xf]
        %v415 = vld [vmem:[#allocation5 + $0x10c] sm:$0xf]
        %v416 = vld [vmem:[#allocation5 + $0x110] sm:$0xf]
        %v417 = vld [vmem:[#allocation5 + $0x114] sm:$0xf]
        %v418 = vld [vmem:[#allocation5 + $0x118] sm:$0xf]
        %v419 = vld [vmem:[#allocation5 + $0x11c] sm:$0xf]
        %v420 = vld [vmem:[%s2] sm:$0x1]
        %v422 = vlaneseq
        %v423 = vshrl.u32 %v422, 7
        %v424 = vsub.s32 0, %v423
        %v425 = vrot.slane %v420, %v424
        %v499 = vunpack.c.l.b16 %v348
        %v500 = vunpack.c.l.b16 %v349
        %v501 = vunpack.c.l.b16 %v350
        %v502 = vunpack.c.l.b16 %v351
        %v503 = vunpack.c.l.b16 %v352
        %v504 = vunpack.c.l.b16 %v353
        %v505 = vunpack.c.l.b16 %v354
        %v506 = vunpack.c.l.b16 %v355
        %v507 = vunpack.c.l.b16 %v356
        %v508 = vunpack.c.l.b16 %v357
        %v509 = vunpack.c.l.b16 %v358
        %v510 = vunpack.c.l.b16 %v359
        %v511 = vunpack.c.l.b16 %v360
        %v512 = vunpack.c.l.b16 %v361
        %v513 = vunpack.c.l.b16 %v362
        %v514 = vunpack.c.l.b16 %v363
        %v515 = vunpack.c.l.b16 %v364
        %v516 = vunpack.c.l.b16 %v365
        %v517 = vunpack.c.l.b16 %v366
        %v518 = vunpack.c.l.b16 %v367
        %v519 = vunpack.c.l.b16 %v368
        %v520 = vunpack.c.l.b16 %v369
        %v521 = vunpack.c.l.b16 %v370
        %v522 = vunpack.c.l.b16 %v371
        %v523 = vunpack.c.l.b16 %v372
        %v524 = vunpack.c.l.b16 %v373
        %v525 = vunpack.c.l.b16 %v374
        %v526 = vunpack.c.l.b16 %v375
        %v527 = vunpack.c.l.b16 %v376
        %v528 = vunpack.c.l.b16 %v377
        %v529 = vunpack.c.l.b16 %v378
        %v530 = vunpack.c.l.b16 %v379
        %v531 = vunpack.c.l.b16 %v380
        %v532 = vunpack.c.l.b16 %v381
        %v533 = vunpack.c.l.b16 %v382
        %v534 = vunpack.c.l.b16 %v383
        %v535 = vunpack.c.l.b16 %v384
        %v536 = vunpack.c.l.b16 %v385
        %v537 = vunpack.c.l.b16 %v386
        %v538 = vunpack.c.l.b16 %v387
        %v539 = vunpack.c.l.b16 %v388
        %v540 = vunpack.c.l.b16 %v389
        %v541 = vunpack.c.l.b16 %v390
        %v542 = vunpack.c.l.b16 %v391
        %v543 = vunpack.c.l.b16 %v392
        %v544 = vunpack.c.l.b16 %v393
        %v545 = vunpack.c.l.b16 %v394
        %v546 = vunpack.c.l.b16 %v395
        %v547 = vunpack.c.l.b16 %v396
        %v548 = vunpack.c.l.b16 %v397
        %v549 = vunpack.c.l.b16 %v398
        %v550 = vunpack.c.l.b16 %v399
        %v551 = vunpack.c.l.b16 %v400
        %v552 = vunpack.c.l.b16 %v401
        %v553 = vunpack.c.l.b16 %v402
        %v554 = vunpack.c.l.b16 %v403
        %v555 = vunpack.c.l.b16 %v404
        %v556 = vunpack.c.l.b16 %v405
        %v557 = vunpack.c.l.b16 %v406
        %v558 = vunpack.c.l.b16 %v407
        %v559 = vunpack.c.l.b16 %v408
        %v560 = vunpack.c.l.b16 %v409
        %v561 = vunpack.c.l.b16 %v410
        %v562 = vunpack.c.l.b16 %v411
        %v563 = vunpack.c.l.b16 %v412
        %v564 = vunpack.c.l.b16 %v413
        %v565 = vunpack.c.l.b16 %v414
        %v566 = vunpack.c.l.b16 %v415
        %v567 = vunpack.c.l.b16 %v416
        %v568 = vunpack.c.l.b16 %v417
        %v569 = vunpack.c.l.b16 %v418
        %v570 = vunpack.c.l.b16 %v419
        %v571 = vpack.c.b16 %v500, %v499
        %v572 = vpack.c.b16 %v502, %v501
        %v573 = vpack.c.b16 %v504, %v503
        %v574 = vpack.c.b16 %v506, %v505
        %v575 = vpack.c.b16 %v508, %v507
        %v576 = vpack.c.b16 %v510, %v509
        %v577 = vpack.c.b16 %v512, %v511
        %v578 = vpack.c.b16 %v514, %v513
        %v579 = vpack.c.b16 %v516, %v515
        %v580 = vpack.c.b16 %v518, %v517
        %v581 = vpack.c.b16 %v520, %v519
        %v582 = vpack.c.b16 %v522, %v521
        %v583 = vpack.c.b16 %v524, %v523
        %v584 = vpack.c.b16 %v526, %v525
        %v585 = vpack.c.b16 %v528, %v527
        %v586 = vpack.c.b16 %v530, %v529
        %v587 = vpack.c.b16 %v532, %v531
        %v588 = vpack.c.b16 %v534, %v533
        %v589 = vpack.c.b16 %v536, %v535
        %v590 = vpack.c.b16 %v538, %v537
        %v591 = vpack.c.b16 %v540, %v539
        %v592 = vpack.c.b16 %v542, %v541
        %v593 = vpack.c.b16 %v544, %v543
        %v594 = vpack.c.b16 %v546, %v545
        %v595 = vpack.c.b16 %v548, %v547
        %v596 = vpack.c.b16 %v550, %v549
        %v597 = vpack.c.b16 %v552, %v551
        %v598 = vpack.c.b16 %v554, %v553
        %v599 = vpack.c.b16 %v556, %v555
        %v600 = vpack.c.b16 %v558, %v557
        %v601 = vpack.c.b16 %v560, %v559
        %v602 = vpack.c.b16 %v562, %v561
        %v603 = vpack.c.b16 %v564, %v563
        %v604 = vpack.c.b16 %v566, %v565
        %v605 = vpack.c.b16 %v568, %v567
        %v606 = vpack.c.b16 %v570, %v569
        %vm643 = vcmask 523264
        %v645 = vsel %vm643, %v347, 0
        %647 = vmatprep.subr.bf16.mxu0 0
        %648 = vmatpush1.bf16.msra.mxu0 %v571
        %649 = vmatprep.subr.bf16.mxu0 0
        %650 = vmatpush1.bf16.msra.mxu0 %v572
        %651 = vmatprep.subr.bf16.mxu0 0
        %652 = vmatpush1.bf16.msra.mxu0 %v573
        %653 = vmatprep.subr.bf16.mxu0 0
        %654 = vmatpush1.bf16.msra.mxu0 %v574
        %655 = vmatprep.subr.bf16.mxu0 0
        %656 = vmatpush1.bf16.msra.mxu0 %v575
        %657 = vmatprep.subr.bf16.mxu0 0
        %658 = vmatpush1.bf16.msra.mxu0 %v576
        %659 = vmatprep.subr.bf16.mxu0 0
        %660 = vmatpush1.bf16.msra.mxu0 %v577
        %661 = vmatprep.subr.bf16.mxu0 0
        %662 = vmatpush1.bf16.msra.mxu0 %v578
        %663 = vmatprep.subr.bf16.mxu0 0
        %664 = vmatpush1.bf16.msra.mxu0 %v579
        %665 = vmatprep.subr.bf16.mxu0 0
        %666 = vmatpush1.bf16.msra.mxu0 %v580
        %667 = vmatprep.subr.bf16.mxu0 0
        %668 = vmatpush1.bf16.msra.mxu0 %v581
        %669 = vmatprep.subr.bf16.mxu0 0
        %670 = vmatpush1.bf16.msra.mxu0 %v582
        %671 = vmatprep.subr.bf16.mxu0 0
        %672 = vmatpush1.bf16.msra.mxu0 %v583
        %673 = vmatprep.subr.bf16.mxu0 0
        %674 = vmatpush1.bf16.msra.mxu0 %v584
        %675 = vmatprep.subr.bf16.mxu0 0
        %676 = vmatpush1.bf16.msra.mxu0 %v585
        %677 = vmatprep.subr.bf16.mxu0 0
        %678 = vmatpush1.bf16.msra.mxu0 %v586
        %679 = vmatprep.mubr.bf16.mxu0 %v344
        %680 = vmatmul.mubr.bf16.gmra.mrb[0].mxu0 %v343
        %v681 = vpop.f32.mrb[0].mxu0
        %v682 = vadd.f32 %v425, %v681
        %v683 = vpop.f32.mrb[0].mxu0
        %v684 = vpop.f32.mrb[0].mxu0
        %v685 = vadd.f32 %v425, %v684
        %v686 = vpop.f32.mrb[0].mxu0
        %687 = vdwg.mxu0
        %688 = vmatprep.subr.bf16.mxu0 0
        %689 = vmatpush1.bf16.msra.mxu0 %v587
        %690 = vmatprep.subr.bf16.mxu0 0
        %691 = vmatpush1.bf16.msra.mxu0 %v588
        %692 = vmatprep.subr.bf16.mxu0 0
        %693 = vmatpush1.bf16.msra.mxu0 %v589
        %694 = vmatprep.subr.bf16.mxu0 0
        %695 = vmatpush1.bf16.msra.mxu0 %v590
        %696 = vmatprep.subr.bf16.mxu0 0
        %697 = vmatpush1.bf16.msra.mxu0 %v591
        %698 = vmatprep.subr.bf16.mxu0 0
        %699 = vmatpush1.bf16.msra.mxu0 %v592
        %700 = vmatprep.subr.bf16.mxu0 0
        %701 = vmatpush1.bf16.msra.mxu0 %v593
        %702 = vmatprep.subr.bf16.mxu0 0
        %703 = vmatpush1.bf16.msra.mxu0 %v594
        %704 = vmatprep.subr.bf16.mxu0 0
        %705 = vmatpush1.bf16.msra.mxu0 %v595
        %706 = vmatprep.subr.bf16.mxu0 0
        %707 = vmatpush1.bf16.msra.mxu0 %v596
        %708 = vmatprep.subr.bf16.mxu0 0
        %709 = vmatpush1.bf16.msra.mxu0 %v597
        %710 = vmatprep.subr.bf16.mxu0 0
        %711 = vmatpush1.bf16.msra.mxu0 %v598
        %712 = vmatprep.subr.bf16.mxu0 0
        %713 = vmatpush1.bf16.msra.mxu0 %v599
        %714 = vmatprep.subr.bf16.mxu0 0
        %715 = vmatpush1.bf16.msra.mxu0 %v600
        %716 = vmatprep.subr.bf16.mxu0 0
        %717 = vmatpush1.bf16.msra.mxu0 %v601
        %718 = vmatprep.subr.bf16.mxu0 0
        %719 = vmatpush1.bf16.msra.mxu0 %v602
        %720 = vmatprep.mubr.bf16.mxu0 %v346
        %721 = vmatmul.mubr.bf16.gmra.mrb[0].mxu0 %v345
        %v722 = vpop.f32.mrb[0].mxu0
        %v723 = vadd.f32 %v682, %v722
        %v724 = vpop.f32.mrb[0].mxu0
        %v725 = vpop.f32.mrb[0].mxu0
        %v726 = vadd.f32 %v685, %v725
        %v727 = vpop.f32.mrb[0].mxu0
        %728 = vdwg.mxu0
        %729 = vmatprep.subr.bf16.mxu0 0
        %730 = vmatpush1.bf16.msra.mxu0 %v603
        %731 = vmatprep.subr.bf16.mxu0 0
        %732 = vmatpush1.bf16.msra.mxu0 %v604
        %733 = vmatprep.subr.bf16.mxu0 0
        %734 = vmatpush1.bf16.msra.mxu0 %v605
        %735 = vmatprep.subr.bf16.mxu0 0
        %736 = vmatpush1.bf16.msra.mxu0 %v606
        %737 = vmatprep.subr.bf16.mxu0 0
        %738 = vmatpush1.bf16.msra.mxu0 0
        %739 = vmatprep.subr.bf16.mxu0 0
        %740 = vmatpush1.bf16.msra.mxu0 0
        %741 = vmatprep.subr.bf16.mxu0 0
        %742 = vmatpush1.bf16.msra.mxu0 0
        %743 = vmatprep.subr.bf16.mxu0 0
        %744 = vmatpush1.bf16.msra.mxu0 0
        %745 = vmatprep.subr.bf16.mxu0 0
        %746 = vmatpush1.bf16.msra.mxu0 0
        %747 = vmatprep.subr.bf16.mxu0 0
        %748 = vmatpush1.bf16.msra.mxu0 0
        %749 = vmatprep.subr.bf16.mxu0 0
        %750 = vmatpush1.bf16.msra.mxu0 0
        %751 = vmatprep.subr.bf16.mxu0 0
        %752 = vmatpush1.bf16.msra.mxu0 0
        %753 = vmatprep.subr.bf16.mxu0 0
        %754 = vmatpush1.bf16.msra.mxu0 0
        %755 = vmatprep.subr.bf16.mxu0 0
        %756 = vmatpush1.bf16.msra.mxu0 0
        %757 = vmatprep.subr.bf16.mxu0 0
        %758 = vmatpush1.bf16.msra.mxu0 0
        %759 = vmatprep.subr.bf16.mxu0 0
        %760 = vmatpush1.bf16.msra.mxu0 0
        %761 = vmatprep.mubr.bf16.mxu0 0
        %762 = vmatmul.mubr.bf16.gmra.mrb[0].mxu0 %v645
        %v763 = vpop.f32.mrb[0].mxu0
        %v764 = vadd.f32 %v723, %v763
        %v765 = vpop.f32.mrb[0].mxu0
        %v766 = vpop.f32.mrb[0].mxu0
        %v767 = vadd.f32 %v726, %v766
        %v768 = vpop.f32.mrb[0].mxu0
        %769 = vdwg.mxu0
        %v770 = vmax.f32 %v764, 0.0
        %v771 = vmax.f32 %v767, 0.0
        %v772 = vpack.c.bf16 %v771, %v770
        %v773 = vld [vmem:[#allocation7] sm:$0xf]
        %v774 = vld [vmem:[#allocation7 + $0x4] sm:$0xf]
        %v775 = vld [vmem:[#allocation7 + $0x8] sm:$0xf]
        %v776 = vld [vmem:[#allocation7 + $0xc] sm:$0xf]
        %v777 = vld [vmem:[#allocation7 + $0x10] sm:$0xf]
        %v778 = vld [vmem:[#allocation7 + $0x14] sm:$0xf]
        %v779 = vld [vmem:[#allocation7 + $0x18] sm:$0xf]
        %v780 = vld [vmem:[#allocation7 + $0x1c] sm:$0xf]
        %v781 = vld [vmem:[#allocation7 + $0x20] sm:$0xf]
        %v782 = vld [vmem:[#allocation7 + $0x24] sm:$0xf]
        %v783 = vld [vmem:[#allocation7 + $0x28] sm:$0xf]
        %v784 = vld [vmem:[#allocation7 + $0x2c] sm:$0xf]
        %v785 = vld [vmem:[#allocation7 + $0x30] sm:$0xf]
        %v786 = vld [vmem:[#allocation7 + $0x34] sm:$0xf]
        %v787 = vld [vmem:[#allocation7 + $0x38] sm:$0xf]
        %v788 = vld [vmem:[#allocation7 + $0x3c] sm:$0xf]
        %v789 = vld [vmem:[%s4] sm:$0x1]
        %v791 = vlaneseq
        %v792 = vshrl.u32 %v791, 7
        %v793 = vsub.s32 0, %v792
        %v794 = vrot.slane %v789, %v793
        %v812 = vunpack.c.l.b16 %v773
        %v813 = vunpack.c.l.b16 %v774
        %v814 = vunpack.c.l.b16 %v775
        %v815 = vunpack.c.l.b16 %v776
        %v816 = vunpack.c.l.b16 %v777
        %v817 = vunpack.c.l.b16 %v778
        %v818 = vunpack.c.l.b16 %v779
        %v819 = vunpack.c.l.b16 %v780
        %v820 = vunpack.c.l.b16 %v781
        %v821 = vunpack.c.l.b16 %v782
        %v822 = vunpack.c.l.b16 %v783
        %v823 = vunpack.c.l.b16 %v784
        %v824 = vunpack.c.l.b16 %v785
        %v825 = vunpack.c.l.b16 %v786
        %v826 = vunpack.c.l.b16 %v787
        %v827 = vunpack.c.l.b16 %v788
        %v828 = vpack.c.b16 %v813, %v812
        %v829 = vpack.c.b16 %v815, %v814
        %v830 = vpack.c.b16 %v817, %v816
        %v831 = vpack.c.b16 %v819, %v818
        %v832 = vpack.c.b16 %v821, %v820
        %v833 = vpack.c.b16 %v823, %v822
        %v834 = vpack.c.b16 %v825, %v824
        %v835 = vpack.c.b16 %v827, %v826
        %844 = vmatprep.subr.bf16.mxu0 0
        %845 = vmatpush1.bf16.msra.mxu0 %v828
        %846 = vmatprep.subr.bf16.mxu0 0
        %847 = vmatpush1.bf16.msra.mxu0 %v829
        %848 = vmatprep.subr.bf16.mxu0 0
        %849 = vmatpush1.bf16.msra.mxu0 %v830
        %850 = vmatprep.subr.bf16.mxu0 0
        %851 = vmatpush1.bf16.msra.mxu0 %v831
        %852 = vmatprep.subr.bf16.mxu0 0
        %853 = vmatpush1.bf16.msra.mxu0 %v832
        %854 = vmatprep.subr.bf16.mxu0 0
        %855 = vmatpush1.bf16.msra.mxu0 %v833
        %856 = vmatprep.subr.bf16.mxu0 0
        %857 = vmatpush1.bf16.msra.mxu0 %v834
        %858 = vmatprep.subr.bf16.mxu0 0
        %859 = vmatpush1.bf16.msra.mxu0 %v835
        %860 = vmatprep.subr.bf16.mxu0 0
        %861 = vmatpush1.bf16.msra.mxu0 0
        %862 = vmatprep.subr.bf16.mxu0 0
        %863 = vmatpush1.bf16.msra.mxu0 0
        %864 = vmatprep.subr.bf16.mxu0 0
        %865 = vmatpush1.bf16.msra.mxu0 0
        %866 = vmatprep.subr.bf16.mxu0 0
        %867 = vmatpush1.bf16.msra.mxu0 0
        %868 = vmatprep.subr.bf16.mxu0 0
        %869 = vmatpush1.bf16.msra.mxu0 0
        %870 = vmatprep.subr.bf16.mxu0 0
        %871 = vmatpush1.bf16.msra.mxu0 0
        %872 = vmatprep.subr.bf16.mxu0 0
        %873 = vmatpush1.bf16.msra.mxu0 0
        %874 = vmatprep.subr.bf16.mxu0 0
        %875 = vmatpush1.bf16.msra.mxu0 0
        %876 = vmatprep.mubr.bf16.mxu0 0
        %877 = vmatmul.mubr.bf16.gmra.mrb[0].mxu0 %v772
        %v878 = vpop.f32.mrb[0].mxu0
        %v879 = vadd.f32 %v794, %v878
        %v880 = vpop.f32.mrb[0].mxu0
        %v881 = vpop.f32.mrb[0].mxu0
        %v882 = vadd.f32 %v794, %v881
        %v883 = vpop.f32.mrb[0].mxu0
        %884 = vdwg.mxu0
        %v885 = vmax.f32 %v879, 0.0
        %v886 = vmax.f32 %v882, 0.0
        %v887 = vld [vmem:[%s5] sm:$0x1]
        %v889 = vlaneseq
        %v890 = vshrl.u32 %v889, 7
        %v891 = vsub.s32 0, %v890
        %v892 = vrot.slane %v887, %v891
        %v894 = vmul.f32 %v885, %v892
        %v895 = vmul.f32 %v886, %v892
        %896 = vadd.xlane.f32.xlu0 %v894
        %v897 = vpop.xlane.xlu0 %896
        %898 = vadd.xlane.f32.xlu0 %v895
        %v899 = vpop.xlane.xlu0 %898
        %s900 = sld [smem:[#allocation2]]
        %v901 = vstv %s900
        %v902 = vadd.f32 %v897, %v901
        %v903 = vadd.f32 %v899, %v901
        %v904 = vxor.u32 %v902, 2147483648
        %v905 = vxor.u32 %v903, 2147483648
        %v906 = vmul.f32 %v904, 1.442695
        %v907 = vpow.pop %v906
        %v908 = vmul.f32 %v905, 1.442695
        %v909 = vpow.pop %v908
        %v910 = vadd.f32 %v907, 1.0
        %v911 = vadd.f32 %v909, 1.0
        %v912 = vrcp.pop %v910
        %v913 = vmul.f32 1.0, %v912
        %v914 = vrcp.pop %v911
        %v915 = vmul.f32 1.0, %v914
        %vm916 = vcmask 7168
        %917 = vst.msk [vmem:[%s330] sm:$0xff] %vm916, %v913
        %918 = vst.msk [vmem:[%s330 + $0x8] sm:$0xff] %vm916, %v915
        %s919 = smul.u32 2, %s23
        %p920 = scmp.lt.s32.totalorder %s919, 3
        %s921 = scalar_select %p920, %s919, 3
        %s922 = smul.addr %s921, 8
        %s923 = scalar_lea.vmem %s7, %s922
        // Predicated region
        $region61: #{tpu_custom_call.1} parent=47 // pred_check
          %p924 = pneg %p193
        $region62: #{tpu_custom_call.1} parent=47 // pred_check_branch
          %926 = sbr.rel (%p924) target = $region64
        $region63: #{tpu_custom_call.1} parent=47 // pred_region
          %s927 = smul.u32 2, %s23
        $region64: #{tpu_custom_call.1} parent=47 // pred_fallthru
          _
      $region48: #{tpu_custom_call.1} parent=5 // pred_fallthru
        _
      %p928 = scmp.le.s32.totalorder 2, %s18
      // Predicated region
      $region65: #{tpu_custom_call.1} parent=5 // pred_check
        %p929 = pneg %p928
      $region66: #{tpu_custom_call.1} parent=5 // pred_check_branch
        %931 = sbr.rel (%p929) target = $region68
      $region67: #{tpu_custom_call.1} parent=5 // pred_region
        %s932 = ssub.s32 %s18, 2
        // Predicated region
        $region69: #{tpu_custom_call.1} parent=67 // pred_check
          %p933 = pneg %p199
        $region70: #{tpu_custom_call.1} parent=67 // pred_check_branch
          %935 = sbr.rel (%p933) target = $region72
        $region71: #{tpu_custom_call.1} parent=67 // pred_region
          %s936 = smul.u32 2, %s24
          %p937 = scmp.lt.s32.totalorder %s936, 3
          %s938 = scalar_select %p937, %s936, 3
          %s939 = smul.addr %s938, 8
          %s940 = scalar_lea.vmem %s7, %s939
        $region72: #{tpu_custom_call.1} parent=67 // pred_fallthru
          _
      $region68: #{tpu_custom_call.1} parent=5 // pred_fallthru
        _
    $region6: #{tpu_custom_call.1} parent=1 // loop_footer
      %s22 = sadd.s32 1, %s18
    $region7: #{tpu_custom_call.1} parent=1 // loop_footer_branch
      %17 = sbr.rel target = $region3
    $region8: #{tpu_custom_call.1} parent=1 // loop_exit
      _
    %941 = vsyncpa [#allocation4], 1
    %s942 = scalar_lea.sflag [#allocation4], 1
    %943 = vsyncpa %s942, 1
    %944 = vsyncpa [#allocation6], 1

</llo_original>
